<compile_context>
chip_gen: v7x
topology: tpu7x:2x2x1
jax: 0.10.0
libtpu: 0.0.40
codegen_flags: <defaults>
</compile_context>

<pallas_src>
import functools

import jax
import jax.numpy as jnp
from jax.experimental import pallas as pl
from jax.experimental.pallas import tpu as pltpu

_LANE = 128
_BF16_SUBLANE = 16          # one bf16 vreg holds 16 sublanes
_NEG_BIG = -1e30            # bias fill for padded classes -> exp() underflows to 0


def _round_up(n, m):
    return ((n + m - 1) // m) * m


# --------------------------------------------------------------------------
# Kernel: one batch tile per grid step; weights resident in VMEM.
# --------------------------------------------------------------------------
def classifier_kernel(x_ref, w1_ref, b1_ref, w2_ref, b2_ref, o_ref):
    # x arrives f32 straight from HBM; cast to bf16 on the VPU for the MXU.
    x = x_ref[...].astype(jnp.bfloat16)
    # layer1: Linear(in -> hidden), bf16 operands, f32 MXU accumulation.
    h = jnp.dot(x, w1_ref[...], preferred_element_type=jnp.float32)
    h = h + b1_ref[...]                      # (1, hid_p) broadcasts over batch
    h = jnp.maximum(h, 0.0)                  # ReLU
    # layer2: Linear(hidden -> out).
    logits = jnp.dot(h.astype(jnp.bfloat16), w2_ref[...],
                     preferred_element_type=jnp.float32)
    logits = logits + b2_ref[...]            # padded classes carry -1e30 bias
    # log_softmax over the (padded) class axis, numerically stable.
    m = jnp.max(logits, axis=-1, keepdims=True)
    shifted = logits - m
    lse = jnp.log(jnp.sum(jnp.exp(shifted), axis=-1, keepdims=True))
    o_ref[...] = (shifted - lse).astype(o_ref.dtype)


# --------------------------------------------------------------------------
# One-time parameter preparation (padding + bf16 cast hoisted out of the
# per-call path).
# --------------------------------------------------------------------------
def prepare_params(w1, b1, w2, b2):
    """w1: (in, hidden), w2: (hidden, out) — i.e. transpose of nn.Linear weight."""
    in_f, hidden = w1.shape
    hidden2, out_f = w2.shape
    assert hidden == hidden2 and b1.shape == (hidden,) and b2.shape == (out_f,)
    in_p = _round_up(in_f, _LANE)
    hid_p = _round_up(hidden, _LANE)
    out_p = _round_up(out_f, _LANE)

    w1_p = jnp.pad(w1, ((0, in_p - in_f), (0, hid_p - hidden))).astype(jnp.bfloat16)
    b1_p = jnp.pad(b1, (0, hid_p - hidden)).reshape(1, hid_p).astype(jnp.float32)
    w2_p = jnp.pad(w2, ((0, hid_p - hidden), (0, out_p - out_f))).astype(jnp.bfloat16)
    b2_p = jnp.pad(b2, (0, out_p - out_f),
                   constant_values=_NEG_BIG).reshape(1, out_p).astype(jnp.float32)
    return {"w1": w1_p, "b1": b1_p, "w2": w2_p, "b2": b2_p,
            "in_features": in_f, "out_features": out_f}


def _choose_tile(B, batch_tile):
    """Batch tile: multiple of 16 (bf16 sublanes); >=2 tiles so both v7x TCs work."""
    b16 = _round_up(B, _BF16_SUBLANE)
    tile = min(batch_tile, b16)
    if tile >= b16 and b16 > _BF16_SUBLANE:
        tile = _round_up(-(-b16 // 2), _BF16_SUBLANE)   # ceil(b16/2), 16-aligned
    return max(_round_up(tile, _BF16_SUBLANE), _BF16_SUBLANE)


def _vmem_budget_bytes(tile, in_p, hid_p, out_p):
    x_blk = 2 * tile * in_p * 4                   # f32 x tile, double-buffered
    o_blk = 2 * tile * out_p * 4                  # f32 out tile, double-buffered
    weights = in_p * hid_p * 2 + hid_p * out_p * 2  # bf16, single-buffered
    biases = (hid_p + out_p) * 4
    # intermediates: x bf16 copy, f32 h, bf16 h copy, f32 logits
    interm = tile * in_p * 2 + tile * hid_p * (4 + 2) + tile * out_p * 4
    total = x_blk + o_blk + weights + biases + interm
    total = int(total * 1.5) + (1 << 20)          # margin for compiler scratch
    return min(max(total, 16 * 1024 * 1024), 56 * 1024 * 1024)


@functools.partial(jax.jit, static_argnames=("out_features", "batch_tile"))
def classifier_forward(x, w1_p, b1_p, w2_p, b2_p, *, out_features, batch_tile=256):
    B, in_f = x.shape
    in_p, hid_p = w1_p.shape
    hid_p2, out_p = w2_p.shape
    assert hid_p == hid_p2 and in_f <= in_p

    x = x.astype(jnp.float32)
    if in_p != in_f:
        x = jnp.pad(x, ((0, 0), (0, in_p - in_f)))

    tile = _choose_tile(B, batch_tile)
    B_p = _round_up(B, tile)
    if B_p != B:
        x = jnp.pad(x, ((0, B_p - B), (0, 0)))

    grid = (B_p // tile,)
    resident = dict(pipeline_mode=pl.Buffered(1))   # fetched once, single-buffered

    out_padded = pl.pallas_call(
        classifier_kernel,
        out_shape=jax.ShapeDtypeStruct((B_p, out_p), jnp.float32),
        grid_spec=pltpu.PrefetchScalarGridSpec(
            num_scalar_prefetch=0,
            grid=grid,
            in_specs=[
                pl.BlockSpec((tile, in_p), lambda i: (i, 0)),             # x tile
                pl.BlockSpec((in_p, hid_p), lambda i: (0, 0), **resident),  # W1
                pl.BlockSpec((1, hid_p), lambda i: (0, 0), **resident),     # b1
                pl.BlockSpec((hid_p, out_p), lambda i: (0, 0), **resident), # W2
                pl.BlockSpec((1, out_p), lambda i: (0, 0), **resident),     # b2
            ],
            out_specs=pl.BlockSpec((tile, out_p), lambda i: (i, 0)),
        ),
        compiler_params=pltpu.CompilerParams(
            dimension_semantics=("parallel",),
            vmem_limit_bytes=_vmem_budget_bytes(tile, in_p, hid_p, out_p),
        ),
    )(x, w1_p, b1_p, w2_p, b2_p)

    # Strip batch padding and padded (fake) classes.
    return out_padded[:B, :out_features]


# --------------------------------------------------------------------------
# Init + reference
# --------------------------------------------------------------------------
def init_params(key, in_features, hidden_size, out_features):
    """Deterministic init mirroring nn.Linear's uniform(-1/sqrt(fan_in), ...)."""
    k1, k2, k3, k4 = jax.random.split(key, 4)
    bound1 = 1.0 / jnp.sqrt(in_features)
    bound2 = 1.0 / jnp.sqrt(hidden_size)
    # Stored already transposed to (in, out) for the kernel.
    w1 = jax.random.uniform(k1, (in_features, hidden_size), jnp.float32, -bound1, bound1)
    b1 = jax.random.uniform(k2, (hidden_size,), jnp.float32, -bound1, bound1)
    w2 = jax.random.uniform(k3, (hidden_size, out_features), jnp.float32, -bound2, bound2)
    b2 = jax.random.uniform(k4, (out_features,), jnp.float32, -bound2, bound2)
    return w1, b1, w2, b2


def reference_forward(x, w1, b1, w2, b2):
    """Pure-JAX reference mirroring the kernel's bf16-operand / f32-acc numerics."""
    h = jnp.dot(x.astype(jnp.bfloat16), w1.astype(jnp.bfloat16),
                preferred_element_type=jnp.float32) + b1
    h = jnp.maximum(h, 0.0)
    logits = jnp.dot(h.astype(jnp.bfloat16), w2.astype(jnp.bfloat16),
                     preferred_element_type=jnp.float32) + b2
    return jax.nn.log_softmax(logits, axis=-1)


if __name__ == "__main__":
    key = jax.random.PRNGKey(0)
    k_x, k_p = jax.random.split(key)

    # Small shapes that exercise the batch-remainder and lane-padding paths.
    batch, in_features, hidden_size, out_features = 20, 40, 96, 10
    x = jax.random.normal(k_x, (batch, in_features), jnp.float32)
    w1, b1, w2, b2 = init_params(k_p, in_features, hidden_size, out_features)

    params = prepare_params(w1, b1, w2, b2)   # one-time pad + bf16 cast
    out = classifier_forward(
        x, params["w1"], params["b1"], params["w2"], params["b2"],
        out_features=params["out_features"], batch_tile=256)
    out = jax.block_until_ready(out)

    ref = reference_forward(x, w1, b1, w2, b2)
    assert out.shape == (batch, out_features)
    assert jnp.allclose(out, ref, atol=5e-3, rtol=5e-3), (
        float(jnp.max(jnp.abs(out - ref))))

    print("KERNEL_OK")
</pallas_src>

<mosaic_0001>
module attributes {stable_mosaic.version = 11 : i64} {
  func.func @classifier_kernel(%arg0: i32, %arg1: memref<16x128xf32, #tpu.memory_space<vmem>>, %arg2: memref<128x128xbf16, #tpu.memory_space<vmem>>, %arg3: memref<1x128xf32, #tpu.memory_space<vmem>>, %arg4: memref<128x128xbf16, #tpu.memory_space<vmem>>, %arg5: memref<1x128xf32, #tpu.memory_space<vmem>>, %arg6: memref<16x128xf32, #tpu.memory_space<vmem>>) attributes {dimension_semantics = [#tpu.dimension_semantics<parallel>], iteration_bounds = array<i64: 2>, scalar_prefetch = 0 : i64, scratch_operands = 0 : i64, tpu.core_type = #tpu.core_type<tc>, window_params = [{transform_indices = @transform_0, window_bounds = array<i64: 16, 128>}, {pipeline_mode = #tpu.pipeline_mode<synchronous>, transform_indices = @transform_1, window_bounds = array<i64: 128, 128>}, {pipeline_mode = #tpu.pipeline_mode<synchronous>, transform_indices = @transform_2, window_bounds = array<i64: 1, 128>}, {pipeline_mode = #tpu.pipeline_mode<synchronous>, transform_indices = @transform_3, window_bounds = array<i64: 128, 128>}, {pipeline_mode = #tpu.pipeline_mode<synchronous>, transform_indices = @transform_4, window_bounds = array<i64: 1, 128>}, {transform_indices = @transform_5, window_bounds = array<i64: 16, 128>}]} {
    %c0 = arith.constant 0 : index
    %c0_0 = arith.constant 0 : index
    %0 = vector.load %arg1[%c0, %c0_0] : memref<16x128xf32, #tpu.memory_space<vmem>>, vector<16x128xf32>
    %1 = arith.truncf %0 : vector<16x128xf32> to vector<16x128xbf16>
    %c0_1 = arith.constant 0 : index
    %c0_2 = arith.constant 0 : index
    %2 = vector.load %arg2[%c0_1, %c0_2] : memref<128x128xbf16, #tpu.memory_space<vmem>>, vector<128x128xbf16>
    %cst = arith.constant dense<0.000000e+00> : vector<16x128xf32>
    %3 = tpu.matmul %1, %2, %cst {dimension_numbers = #tpu.dot_dimension_numbers<[1], [0], [0], [1], [0, 0, 1, 1], [], []>} : vector<16x128xbf16>, vector<128x128xbf16>, vector<16x128xf32> -> vector<16x128xf32>
    %c0_3 = arith.constant 0 : index
    %c0_4 = arith.constant 0 : index
    %4 = vector.load %arg3[%c0_3, %c0_4] : memref<1x128xf32, #tpu.memory_space<vmem>>, vector<1x128xf32>
    %5 = vector.broadcast %4 : vector<1x128xf32> to vector<16x128xf32>
    %6 = arith.addf %3, %5 : vector<16x128xf32>
    %cst_5 = arith.constant 0.000000e+00 : f32
    %7 = vector.broadcast %cst_5 : f32 to vector<16x128xf32>
    %8 = arith.maximumf %6, %7 : vector<16x128xf32>
    %9 = arith.truncf %8 : vector<16x128xf32> to vector<16x128xbf16>
    %c0_6 = arith.constant 0 : index
    %c0_7 = arith.constant 0 : index
    %10 = vector.load %arg4[%c0_6, %c0_7] : memref<128x128xbf16, #tpu.memory_space<vmem>>, vector<128x128xbf16>
    %cst_8 = arith.constant dense<0.000000e+00> : vector<16x128xf32>
    %11 = tpu.matmul %9, %10, %cst_8 {dimension_numbers = #tpu.dot_dimension_numbers<[1], [0], [0], [1], [0, 0, 1, 1], [], []>} : vector<16x128xbf16>, vector<128x128xbf16>, vector<16x128xf32> -> vector<16x128xf32>
    %c0_9 = arith.constant 0 : index
    %c0_10 = arith.constant 0 : index
    %12 = vector.load %arg5[%c0_9, %c0_10] : memref<1x128xf32, #tpu.memory_space<vmem>>, vector<1x128xf32>
    %13 = vector.broadcast %12 : vector<1x128xf32> to vector<16x128xf32>
    %14 = arith.addf %11, %13 : vector<16x128xf32>
    %cst_11 = arith.constant dense<0xFF800000> : vector<16xf32>
    %15 = vector.multi_reduction <maximumf>, %14, %cst_11 [1] : vector<16x128xf32> to vector<16xf32>
    %16 = vector.shape_cast %15 : vector<16xf32> to vector<16x1xf32>
    %17 = vector.broadcast %16 : vector<16x1xf32> to vector<16x128xf32>
    %18 = arith.subf %14, %17 : vector<16x128xf32>
    %19 = math.exp %18 : vector<16x128xf32>
    %cst_12 = arith.constant dense<0.000000e+00> : vector<16xf32>
    %20 = vector.multi_reduction <add>, %19, %cst_12 [1] : vector<16x128xf32> to vector<16xf32>
    %21 = vector.shape_cast %20 : vector<16xf32> to vector<16x1xf32>
    %22 = math.log %21 : vector<16x1xf32>
    %23 = vector.broadcast %22 : vector<16x1xf32> to vector<16x128xf32>
    %24 = arith.subf %18, %23 : vector<16x128xf32>
    %c0_13 = arith.constant 0 : index
    %c0_14 = arith.constant 0 : index
    %25 = vector.load %arg6[%c0_13, %c0_14] : memref<16x128xf32, #tpu.memory_space<vmem>>, vector<16x128xf32>
    tpu.vector_store %arg6[%c0_13, %c0_14], %24 {strides = array<i32>} : memref<16x128xf32, #tpu.memory_space<vmem>>, vector<16x128xf32>,
    return
  }
  func.func @transform_0(%arg0: i32) -> (i32, i32) {
    %c0_i32 = arith.constant 0 : i32
    %c0_i32_0 = arith.constant 0 : i32
    return %arg0, %c0_i32 : i32, i32
  }
  func.func @transform_1(%arg0: i32) -> (i32, i32) {
    %c0_i32 = arith.constant 0 : i32
    %c0_i32_0 = arith.constant 0 : i32
    %c0_i32_1 = arith.constant 0 : i32
    return %c0_i32, %c0_i32_0 : i32, i32
  }
  func.func @transform_2(%arg0: i32) -> (i32, i32) {
    %c0_i32 = arith.constant 0 : i32
    %c0_i32_0 = arith.constant 0 : i32
    %c0_i32_1 = arith.constant 0 : i32
    return %c0_i32, %c0_i32_0 : i32, i32
  }
  func.func @transform_3(%arg0: i32) -> (i32, i32) {
    %c0_i32 = arith.constant 0 : i32
    %c0_i32_0 = arith.constant 0 : i32
    %c0_i32_1 = arith.constant 0 : i32
    return %c0_i32, %c0_i32_0 : i32, i32
  }
  func.func @transform_4(%arg0: i32) -> (i32, i32) {
    %c0_i32 = arith.constant 0 : i32
    %c0_i32_0 = arith.constant 0 : i32
    %c0_i32_1 = arith.constant 0 : i32
    return %c0_i32, %c0_i32_0 : i32, i32
  }
  func.func @transform_5(%arg0: i32) -> (i32, i32) {
    %c0_i32 = arith.constant 0 : i32
    %c0_i32_0 = arith.constant 0 : i32
    return %arg0, %c0_i32 : i32, i32
  }
}

</mosaic_0001>

<llo_original>
// kernel: classifier_forward.1
$region0: #{classifier_forward.1}
  #allocation0 [shape = 'u32[]', space=smem, size = 0x4, offset = 0x4, fixed_abs, tag = 'smem constant byte address 0x4 - core index']
  #allocation1 [shape = 'u32[144,128]{1,0:T(1,128)}', space=vmem, size = 0x12000, scoped, tag = 'internal scratch']
  %s0 = inlined_call_operand.vmem [shape: f32[32,128], index: 0, kind: input, shape index: {}]
  %s1 = inlined_call_operand.hbm [shape: bf16[128,128], index: 1, kind: input, shape index: {}]
  %s2 = inlined_call_operand.vmem [shape: f32[1,128], index: 2, kind: input, shape index: {}]
  %s3 = inlined_call_operand.vmem [shape: bf16[128,128], index: 3, kind: input, shape index: {}]
  %s4 = inlined_call_operand.vmem [shape: f32[1,128], index: 4, kind: input, shape index: {}]
  %s5 = inlined_call_operand.vmem [shape: f32[32,128], index: 5, kind: output, shape index: {}]
  %s6 = sld [smem:[#allocation0]]
  $region57: #{classifier_forward.1} parent=0
    _
  %s8 = ssub.s32 1, %s6
  %s9 = scalar_select 0, %s8, %s6
  $region1: #{classifier_forward.1} parent=0
    #allocation2 [shape = 'u8[32768]{0}', space=vmem, size = 0x8000, scoped, tag = 'input window, operand 1, single buffered']
    #allocation3 [shape = 's32[2]{0}', space=sflag, size = 0x8, scoped, tag = 'scoped memory for classifier_forward.1']
    %10 = vsyncpa [#allocation3], 0
    loop: start=0, step=1, limit=4
    $region2: #{classifier_forward.1} parent=1 // loop_pre_header
      _
    $region3: #{classifier_forward.1} parent=1 // loop_header
      %s12 = sphi 0, %s16
      %p13 = scmp.ge.s32.totalorder %s12, 4
      %s22 = sphi 0, %s24
      %s25 = sphi 0, %s22
      %s26 = sphi 0, %s25
      %s42 = sphi 0, %s26
      %s46 = sphi 0, %s46
      %s48 = sphi 0, %s46
      %s49 = sphi 0, %s48
      %s63 = sphi 0, %s49
      %s67 = sphi 0, %s67
      %s69 = sphi 0, %s67
      %s70 = sphi 0, %s69
      %s84 = sphi 0, %s70
      %s88 = sphi 0, %s88
      %s90 = sphi 0, %s88
      %s91 = sphi 0, %s90
      %s105 = sphi 0, %s91
      %s109 = sphi 0, %s109
      %s111 = sphi 0, %s109
      %s112 = sphi 0, %s111
      %s126 = sphi 0, %s112
      %s132 = sphi 0, %s134
      %s135 = sphi 0, %s132
      %s136 = sphi 0, %s135
      %s152 = sphi 0, %s136
    $region4: #{classifier_forward.1} parent=1 // loop_header_branch
      %15 = sbr.rel (%p13) target = $region8
    $region5: #{classifier_forward.1} parent=1 // loop_body
      %s17 = ssub.s32 %s12, 1
      %s18 = ssub.s32 %s12, 2
      %s19 = sadd.s32 %s12, 1
      %s20 = ssub.s32 %s12, %s19
      %p21 = scmp.eq.s32.totalorder %s20, 0
      %s23 = sadd.s32 %s22, 1
      %s24 = scalar_select %p21, %s22, %s23
      %p27 = pneg %p21
      %p28 = scmp.eq.s32.totalorder %s12, 1
      %p29 = por %p27, %p28
      %p30 = scmp.ne.s32.totalorder %s22, %s25
      %p31 = scmp.eq.s32.totalorder %s12, 0
      %p32 = por %p30, %p31
      %p33 = scmp.ne.s32.totalorder %s22, %s25
      %p34 = scmp.eq.s32.totalorder %s17, 1
      %p35 = por %p33, %p34
      %p36 = scmp.ne.s32.totalorder %s25, %s26
      %p37 = scmp.eq.s32.totalorder %s17, 0
      %p38 = por %p36, %p37
      %p39 = scmp.ne.s32.totalorder %s25, %s26
      %p40 = scmp.eq.s32.totalorder %s18, 1
      %p41 = por %p39, %p40
      %p43 = scmp.ne.s32.totalorder %s26, %s42
      %p44 = scmp.eq.s32.totalorder %s18, 0
      %p45 = por %p43, %p44
      %s47 = sadd.s32 %s46, 1
      %p50 = scmp.eq.s32.totalorder %s12, 1
      %p51 = scmp.ne.s32.totalorder %s46, %s48
      %p52 = scmp.eq.s32.totalorder %s12, 0
      %p53 = por %p51, %p52
      %p54 = scmp.ne.s32.totalorder %s46, %s48
      %p55 = scmp.eq.s32.totalorder %s17, 1
      %p56 = por %p54, %p55
      %p57 = scmp.ne.s32.totalorder %s48, %s49
      %p58 = scmp.eq.s32.totalorder %s17, 0
      %p59 = por %p57, %p58
      %p60 = scmp.ne.s32.totalorder %s48, %s49
      %p61 = scmp.eq.s32.totalorder %s18, 1
      %p62 = por %p60, %p61
      %p64 = scmp.ne.s32.totalorder %s49, %s63
      %p65 = scmp.eq.s32.totalorder %s18, 0
      %p66 = por %p64, %p65
      %s68 = sadd.s32 %s67, 1
      %p71 = scmp.eq.s32.totalorder %s12, 1
      %p72 = scmp.ne.s32.totalorder %s67, %s69
      %p73 = scmp.eq.s32.totalorder %s12, 0
      %p74 = por %p72, %p73
      %p75 = scmp.ne.s32.totalorder %s67, %s69
      %p76 = scmp.eq.s32.totalorder %s17, 1
      %p77 = por %p75, %p76
      %p78 = scmp.ne.s32.totalorder %s69, %s70
      %p79 = scmp.eq.s32.totalorder %s17, 0
      %p80 = por %p78, %p79
      %p81 = scmp.ne.s32.totalorder %s69, %s70
      %p82 = scmp.eq.s32.totalorder %s18, 1
      %p83 = por %p81, %p82
      %p85 = scmp.ne.s32.totalorder %s70, %s84
      %p86 = scmp.eq.s32.totalorder %s18, 0
      %p87 = por %p85, %p86
      %s89 = sadd.s32 %s88, 1
      %p92 = scmp.eq.s32.totalorder %s12, 1
      %p93 = scmp.ne.s32.totalorder %s88, %s90
      %p94 = scmp.eq.s32.totalorder %s12, 0
      %p95 = por %p93, %p94
      %p96 = scmp.ne.s32.totalorder %s88, %s90
      %p97 = scmp.eq.s32.totalorder %s17, 1
      %p98 = por %p96, %p97
      %p99 = scmp.ne.s32.totalorder %s90, %s91
      %p100 = scmp.eq.s32.totalorder %s17, 0
      %p101 = por %p99, %p100
      %p102 = scmp.ne.s32.totalorder %s90, %s91
      %p103 = scmp.eq.s32.totalorder %s18, 1
      %p104 = por %p102, %p103
      %p106 = scmp.ne.s32.totalorder %s91, %s105
      %p107 = scmp.eq.s32.totalorder %s18, 0
      %p108 = por %p106, %p107
      %s110 = sadd.s32 %s109, 1
      %p113 = scmp.eq.s32.totalorder %s12, 1
      %p114 = scmp.ne.s32.totalorder %s109, %s111
      %p115 = scmp.eq.s32.totalorder %s12, 0
      %p116 = por %p114, %p115
      %p117 = scmp.ne.s32.totalorder %s109, %s111
      %p118 = scmp.eq.s32.totalorder %s17, 1
      %p119 = por %p117, %p118
      %p120 = scmp.ne.s32.totalorder %s111, %s112
      %p121 = scmp.eq.s32.totalorder %s17, 0
      %p122 = por %p120, %p121
      %p123 = scmp.ne.s32.totalorder %s111, %s112
      %p124 = scmp.eq.s32.totalorder %s18, 1
      %p125 = por %p123, %p124
      %p127 = scmp.ne.s32.totalorder %s112, %s126
      %p128 = scmp.eq.s32.totalorder %s18, 0
      %p129 = por %p127, %p128
      %s130 = ssub.s32 %s12, %s19
      %p131 = scmp.eq.s32.totalorder %s130, 0
      %s133 = sadd.s32 %s132, 1
      %s134 = scalar_select %p131, %s132, %s133
      %p137 = pneg %p131
      %p138 = scmp.eq.s32.totalorder %s12, 1
      %p139 = por %p137, %p138
      %p140 = scmp.ne.s32.totalorder %s132, %s135
      %p141 = scmp.eq.s32.totalorder %s12, 0
      %p142 = por %p140, %p141
      %p143 = scmp.ne.s32.totalorder %s132, %s135
      %p144 = scmp.eq.s32.totalorder %s17, 1
      %p145 = por %p143, %p144
      %p146 = scmp.ne.s32.totalorder %s135, %s136
      %p147 = scmp.eq.s32.totalorder %s17, 0
      %p148 = por %p146, %p147
      %p149 = scmp.ne.s32.totalorder %s135, %s136
      %p150 = scmp.eq.s32.totalorder %s18, 1
      %p151 = por %p149, %p150
      %p153 = scmp.ne.s32.totalorder %s136, %s152
      %p154 = scmp.eq.s32.totalorder %s18, 0
      %p155 = por %p153, %p154
      %p156 = scmp.le.s32.totalorder 1, %s12
      %p157 = scmp.lt.s32.totalorder %s12, 3
      %p158 = pnand %p156, %p157
      %p159 = pneg %p158
      // Predicated region
      $region9: #{classifier_forward.1} parent=5 // pred_check
        _
      $region10: #{classifier_forward.1} parent=5 // pred_check_branch
        %161 = sbr.rel (%p158) target = $region12
      $region11: #{classifier_forward.1} parent=5 // pred_region
        %s162 = ssub.s32 %s12, 1
        // Predicated region
        $region13: #{classifier_forward.1} parent=11 // pred_check
          %p163 = pneg %p59
        $region14: #{classifier_forward.1} parent=11 // pred_check_branch
          %165 = sbr.rel (%p163) target = $region16
        $region15: #{classifier_forward.1} parent=11 // pred_region
          %s167 = ssub.s32 1024, 1024
          %168 = vsyncadd [#allocation3], %s167
          %s169 = sshll.u32 [#allocation2], 4
          %s170 = int_to_ptr.vmem [resolvable:$true] %s169
          %175 = dma.hbm_to_vmem [thread:$0]  %s1, 1024, %s170, [#allocation3], 64, 64, 4
        $region16: #{classifier_forward.1} parent=11 // pred_fallthru
          _
        // Predicated region
        $region17: #{classifier_forward.1} parent=11 // pred_check
          %p176 = pneg %p80
        $region18: #{classifier_forward.1} parent=11 // pred_check_branch
          %178 = sbr.rel (%p176) target = $region20
        $region19: #{classifier_forward.1} parent=11 // pred_region
          _
        $region20: #{classifier_forward.1} parent=11 // pred_fallthru
          _
        // Predicated region
        $region21: #{classifier_forward.1} parent=11 // pred_check
          %p179 = pneg %p101
        $region22: #{classifier_forward.1} parent=11 // pred_check_branch
          %181 = sbr.rel (%p179) target = $region24
        $region23: #{classifier_forward.1} parent=11 // pred_region
          _
        $region24: #{classifier_forward.1} parent=11 // pred_fallthru
          _
        // Predicated region
        $region25: #{classifier_forward.1} parent=11 // pred_check
          %p182 = pneg %p122
        $region26: #{classifier_forward.1} parent=11 // pred_check_branch
          %184 = sbr.rel (%p182) target = $region28
        $region27: #{classifier_forward.1} parent=11 // pred_region
          _
        $region28: #{classifier_forward.1} parent=11 // pred_fallthru
          _
      $region12: #{classifier_forward.1} parent=5 // pred_fallthru
        _
      %p185 = scmp.lt.s32.totalorder %s12, 2
      // Predicated region
      $region29: #{classifier_forward.1} parent=5 // pred_check
        %p186 = pneg %p185
      $region30: #{classifier_forward.1} parent=5 // pred_check_branch
        %188 = sbr.rel (%p186) target = $region32
      $region31: #{classifier_forward.1} parent=5 // pred_region
        // Predicated region
        $region33: #{classifier_forward.1} parent=31 // pred_check
          %p189 = pneg %p32
        $region34: #{classifier_forward.1} parent=31 // pred_check_branch
          %191 = sbr.rel (%p189) target = $region36
        $region35: #{classifier_forward.1} parent=31 // pred_region
          %s192 = smul.u32 2, %s12
          %p193 = scmp.lt.s32.totalorder %s192, 3
          %s194 = scalar_select %p193, %s192, 3
          %s195 = smul.addr %s194, 8
          %s196 = scalar_lea.vmem %s0, %s195
          %s197 = smul.u32 2, %s12
        $region36: #{classifier_forward.1} parent=31 // pred_fallthru
          _
      $region32: #{classifier_forward.1} parent=5 // pred_fallthru
        _
      %p198 = scmp.le.s32.totalorder 1, %s12
      %p199 = scmp.lt.s32.totalorder %s12, 3
      %p200 = pnand %p198, %p199
      %p201 = pneg %p200
      // Predicated region
      $region37: #{classifier_forward.1} parent=5 // pred_check
        _
      $region38: #{classifier_forward.1} parent=5 // pred_check_branch
        %203 = sbr.rel (%p200) target = $region40
      $region39: #{classifier_forward.1} parent=5 // pred_region
        %s204 = ssub.s32 %s12, 1
        // Predicated region
        $region41: #{classifier_forward.1} parent=39 // pred_check
          %p205 = pneg %p59
        $region42: #{classifier_forward.1} parent=39 // pred_check_branch
          %207 = sbr.rel (%p205) target = $region44
        $region43: #{classifier_forward.1} parent=39 // pred_region
          %208 = dma.done [#allocation3], 1024
        $region44: #{classifier_forward.1} parent=39 // pred_fallthru
          _
        %s209 = smul.u32 2, %s17
        %p210 = scmp.lt.s32.totalorder %s209, 3
        %s211 = scalar_select %p210, %s209, 3
        %s212 = smul.addr %s211, 8
        %s213 = scalar_lea.vmem %s0, %s212
        %p214 = pneg %p38
        %p215 = pneg %p35
        %p216 = pneg %p59
        %p217 = pneg %p56
        %p218 = pneg %p80
        %p219 = pneg %p77
        %p220 = pneg %p101
        %p221 = pneg %p98
        %p222 = pneg %p122
        %p223 = pneg %p119
        %p224 = pneg %p148
        %p225 = pneg %p145
        %s226 = smul.u32 2, %s17
        %p227 = scmp.lt.s32.totalorder %s226, 3
        %s228 = scalar_select %p227, %s226, 3
        %s229 = smul.addr %s228, 8
        %s230 = scalar_lea.vmem %s5, %s229
        %s231 = smul.u32 2, %s17
        %p232 = scmp.lt.s32.totalorder %s231, 3
        %s233 = scalar_select %p232, %s231, 3
        %s234 = smul.addr %s233, 8
        %s235 = scalar_lea.vmem %s0, %s234
        %s236 = smul.u32 2, %s17
        %s237 = smul.u32 2, %s17
        %p238 = scmp.lt.s32.totalorder %s237, 3
        %s239 = scalar_select %p238, %s237, 3
        %s240 = smul.addr %s239, 8
        %s241 = scalar_lea.vmem %s5, %s240
        %s242 = smul.u32 2, %s17
        %v244 = vld [vmem:[%s235] sm:$0xff]
        %v245 = vld [vmem:[%s235 + $0x8] sm:$0xff]
        %v246 = vpack.c.bf16 %v245, %v244
        %v247 = vld [vmem:[#allocation2] sm:$0xf]
        %v248 = vld [vmem:[#allocation2 + $0x4] sm:$0xf]
        %v249 = vld [vmem:[#allocation2 + $0x8] sm:$0xf]
        %v250 = vld [vmem:[#allocation2 + $0xc] sm:$0xf]
        %v251 = vld [vmem:[#allocation2 + $0x10] sm:$0xf]
        %v252 = vld [vmem:[#allocation2 + $0x14] sm:$0xf]
        %v253 = vld [vmem:[#allocation2 + $0x18] sm:$0xf]
        %v254 = vld [vmem:[#allocation2 + $0x1c] sm:$0xf]
        %v255 = vld [vmem:[#allocation2 + $0x20] sm:$0xf]
        %v256 = vld [vmem:[#allocation2 + $0x24] sm:$0xf]
        %v257 = vld [vmem:[#allocation2 + $0x28] sm:$0xf]
        %v258 = vld [vmem:[#allocation2 + $0x2c] sm:$0xf]
        %v259 = vld [vmem:[#allocation2 + $0x30] sm:$0xf]
        %v260 = vld [vmem:[#allocation2 + $0x34] sm:$0xf]
        %v261 = vld [vmem:[#allocation2 + $0x38] sm:$0xf]
        %v262 = vld [vmem:[#allocation2 + $0x3c] sm:$0xf]
        %v263 = vld [vmem:[%s2] sm:$0x1]
        %v265 = vlaneseq
        %v266 = vshrl.u32 %v265, 7
        %v267 = vsub.s32 0, %v266
        %v268 = vrot.slane %v263, %v267
        %v286 = vunpack.c.l.b16 %v247
        %v287 = vunpack.c.l.b16 %v248
        %v288 = vunpack.c.l.b16 %v249
        %v289 = vunpack.c.l.b16 %v250
        %v290 = vunpack.c.l.b16 %v251
        %v291 = vunpack.c.l.b16 %v252
        %v292 = vunpack.c.l.b16 %v253
        %v293 = vunpack.c.l.b16 %v254
        %v294 = vunpack.c.l.b16 %v255
        %v295 = vunpack.c.l.b16 %v256
        %v296 = vunpack.c.l.b16 %v257
        %v297 = vunpack.c.l.b16 %v258
        %v298 = vunpack.c.l.b16 %v259
        %v299 = vunpack.c.l.b16 %v260
        %v300 = vunpack.c.l.b16 %v261
        %v301 = vunpack.c.l.b16 %v262
        %v302 = vpack.c.b16 %v287, %v286
        %v303 = vpack.c.b16 %v289, %v288
        %v304 = vpack.c.b16 %v291, %v290
        %v305 = vpack.c.b16 %v293, %v292
        %v306 = vpack.c.b16 %v295, %v294
        %v307 = vpack.c.b16 %v297, %v296
        %v308 = vpack.c.b16 %v299, %v298
        %v309 = vpack.c.b16 %v301, %v300
        %318 = vmatprep.subr.bf16.mxu0 0
        %319 = vmatpush1.bf16.msra.mxu0 %v302
        %320 = vmatprep.subr.bf16.mxu0 0
        %321 = vmatpush1.bf16.msra.mxu0 %v303
        %322 = vmatprep.subr.bf16.mxu0 0
        %323 = vmatpush1.bf16.msra.mxu0 %v304
        %324 = vmatprep.subr.bf16.mxu0 0
        %325 = vmatpush1.bf16.msra.mxu0 %v305
        %326 = vmatprep.subr.bf16.mxu0 0
        %327 = vmatpush1.bf16.msra.mxu0 %v306
        %328 = vmatprep.subr.bf16.mxu0 0
        %329 = vmatpush1.bf16.msra.mxu0 %v307
        %330 = vmatprep.subr.bf16.mxu0 0
        %331 = vmatpush1.bf16.msra.mxu0 %v308
        %332 = vmatprep.subr.bf16.mxu0 0
        %333 = vmatpush1.bf16.msra.mxu0 %v309
        %334 = vmatprep.subr.bf16.mxu0 0
        %335 = vmatpush1.bf16.msra.mxu0 0
        %336 = vmatprep.subr.bf16.mxu0 0
        %337 = vmatpush1.bf16.msra.mxu0 0
        %338 = vmatprep.subr.bf16.mxu0 0
        %339 = vmatpush1.bf16.msra.mxu0 0
        %340 = vmatprep.subr.bf16.mxu0 0
        %341 = vmatpush1.bf16.msra.mxu0 0
        %342 = vmatprep.subr.bf16.mxu0 0
        %343 = vmatpush1.bf16.msra.mxu0 0
        %344 = vmatprep.subr.bf16.mxu0 0
        %345 = vmatpush1.bf16.msra.mxu0 0
        %346 = vmatprep.subr.bf16.mxu0 0
        %347 = vmatpush1.bf16.msra.mxu0 0
        %348 = vmatprep.subr.bf16.mxu0 0
        %349 = vmatpush1.bf16.msra.mxu0 0
        %350 = vmatprep.mubr.bf16.mxu0 0
        %351 = vmatmul.mubr.bf16.gmra.mrb[0].mxu0 %v246
        %v352 = vpop.f32.mrb[0].mxu0
        %v353 = vadd.f32 %v268, %v352
        %v354 = vpop.f32.mrb[0].mxu0
        %v355 = vpop.f32.mrb[0].mxu0
        %v356 = vadd.f32 %v268, %v355
        %v357 = vpop.f32.mrb[0].mxu0
        %358 = vdwg.mxu0
        %v359 = vmax.f32 %v353, 0.0
        %v360 = vmax.f32 %v356, 0.0
        %v361 = vpack.c.bf16 %v360, %v359
        %v362 = vld [vmem:[%s3] sm:$0xf]
        %v363 = vld [vmem:[%s3 + $0x4] sm:$0xf]
        %v364 = vld [vmem:[%s3 + $0x8] sm:$0xf]
        %v365 = vld [vmem:[%s3 + $0xc] sm:$0xf]
        %v366 = vld [vmem:[%s3 + $0x10] sm:$0xf]
        %v367 = vld [vmem:[%s3 + $0x14] sm:$0xf]
        %v368 = vld [vmem:[%s3 + $0x18] sm:$0xf]
        %v369 = vld [vmem:[%s3 + $0x1c] sm:$0xf]
        %v370 = vld [vmem:[%s3 + $0x20] sm:$0xf]
        %v371 = vld [vmem:[%s3 + $0x24] sm:$0xf]
        %v372 = vld [vmem:[%s3 + $0x28] sm:$0xf]
        %v373 = vld [vmem:[%s3 + $0x2c] sm:$0xf]
        %v374 = vld [vmem:[%s3 + $0x30] sm:$0xf]
        %v375 = vld [vmem:[%s3 + $0x34] sm:$0xf]
        %v376 = vld [vmem:[%s3 + $0x38] sm:$0xf]
        %v377 = vld [vmem:[%s3 + $0x3c] sm:$0xf]
        %v378 = vld [vmem:[%s4] sm:$0x1]
        %v380 = vlaneseq
        %v381 = vshrl.u32 %v380, 7
        %v382 = vsub.s32 0, %v381
        %v383 = vrot.slane %v378, %v382
        %v401 = vunpack.c.l.b16 %v362
        %v402 = vunpack.c.l.b16 %v363
        %v403 = vunpack.c.l.b16 %v364
        %v404 = vunpack.c.l.b16 %v365
        %v405 = vunpack.c.l.b16 %v366
        %v406 = vunpack.c.l.b16 %v367
        %v407 = vunpack.c.l.b16 %v368
        %v408 = vunpack.c.l.b16 %v369
        %v409 = vunpack.c.l.b16 %v370
        %v410 = vunpack.c.l.b16 %v371
        %v411 = vunpack.c.l.b16 %v372
        %v412 = vunpack.c.l.b16 %v373
        %v413 = vunpack.c.l.b16 %v374
        %v414 = vunpack.c.l.b16 %v375
        %v415 = vunpack.c.l.b16 %v376
        %v416 = vunpack.c.l.b16 %v377
        %v417 = vpack.c.b16 %v402, %v401
        %v418 = vpack.c.b16 %v404, %v403
        %v419 = vpack.c.b16 %v406, %v405
        %v420 = vpack.c.b16 %v408, %v407
        %v421 = vpack.c.b16 %v410, %v409
        %v422 = vpack.c.b16 %v412, %v411
        %v423 = vpack.c.b16 %v414, %v413
        %v424 = vpack.c.b16 %v416, %v415
        %433 = vmatprep.subr.bf16.mxu0 0
        %434 = vmatpush1.bf16.msra.mxu0 %v417
        %435 = vmatprep.subr.bf16.mxu0 0
        %436 = vmatpush1.bf16.msra.mxu0 %v418
        %437 = vmatprep.subr.bf16.mxu0 0
        %438 = vmatpush1.bf16.msra.mxu0 %v419
        %439 = vmatprep.subr.bf16.mxu0 0
        %440 = vmatpush1.bf16.msra.mxu0 %v420
        %441 = vmatprep.subr.bf16.mxu0 0
        %442 = vmatpush1.bf16.msra.mxu0 %v421
        %443 = vmatprep.subr.bf16.mxu0 0
        %444 = vmatpush1.bf16.msra.mxu0 %v422
        %445 = vmatprep.subr.bf16.mxu0 0
        %446 = vmatpush1.bf16.msra.mxu0 %v423
        %447 = vmatprep.subr.bf16.mxu0 0
        %448 = vmatpush1.bf16.msra.mxu0 %v424
        %449 = vmatprep.subr.bf16.mxu0 0
        %450 = vmatpush1.bf16.msra.mxu0 0
        %451 = vmatprep.subr.bf16.mxu0 0
        %452 = vmatpush1.bf16.msra.mxu0 0
        %453 = vmatprep.subr.bf16.mxu0 0
        %454 = vmatpush1.bf16.msra.mxu0 0
        %455 = vmatprep.subr.bf16.mxu0 0
        %456 = vmatpush1.bf16.msra.mxu0 0
        %457 = vmatprep.subr.bf16.mxu0 0
        %458 = vmatpush1.bf16.msra.mxu0 0
        %459 = vmatprep.subr.bf16.mxu0 0
        %460 = vmatpush1.bf16.msra.mxu0 0
        %461 = vmatprep.subr.bf16.mxu0 0
        %462 = vmatpush1.bf16.msra.mxu0 0
        %463 = vmatprep.subr.bf16.mxu0 0
        %464 = vmatpush1.bf16.msra.mxu0 0
        %465 = vmatprep.mubr.bf16.mxu0 0
        %466 = vmatmul.mubr.bf16.gmra.mrb[0].mxu0 %v361
        %v467 = vpop.f32.mrb[0].mxu0
        %v468 = vadd.f32 %v383, %v467
        %v469 = vpop.f32.mrb[0].mxu0
        %v470 = vpop.f32.mrb[0].mxu0
        %v471 = vadd.f32 %v383, %v470
        %v472 = vpop.f32.mrb[0].mxu0
        %473 = vdwg.mxu0
        %474 = vmax.xlane.f32.xlu0 %v468
        %v475 = vpop.xlane.xlu0 %474
        %476 = vmax.xlane.f32.xlu0 %v471
        %v477 = vpop.xlane.xlu0 %476
        %v478 = vsub.f32 %v468, %v475
        %v479 = vsub.f32 %v471, %v477
        %v480 = vmul.f32 %v478, 1.442695
        %v481 = vpow.pop %v480
        %v482 = vmul.f32 %v479, 1.442695
        %v483 = vpow.pop %v482
        %484 = vadd.xlane.f32.xlu0 %v481
        %v485 = vpop.xlane.xlu0 %484
        %486 = vadd.xlane.f32.xlu0 %v483
        %v487 = vpop.xlane.xlu0 %486
        %v488 = vlog2.pop %v485
        %v489 = vmul.f32 %v488, 0.6931472
        %v490 = vlog2.pop %v487
        %v491 = vmul.f32 %v490, 0.6931472
        %v492 = vsub.f32 %v478, %v489
        %v493 = vsub.f32 %v479, %v491
        %494 = vst [vmem:[%s241] sm:$0xff] %v492
        %495 = vst [vmem:[%s241 + $0x8] sm:$0xff] %v493
        %s496 = smul.u32 2, %s17
        %p497 = scmp.lt.s32.totalorder %s496, 3
        %s498 = scalar_select %p497, %s496, 3
        %s499 = smul.addr %s498, 8
        %s500 = scalar_lea.vmem %s5, %s499
        // Predicated region
        $region45: #{classifier_forward.1} parent=39 // pred_check
          %p501 = pneg %p145
        $region46: #{classifier_forward.1} parent=39 // pred_check_branch
          %503 = sbr.rel (%p501) target = $region48
        $region47: #{classifier_forward.1} parent=39 // pred_region
          %s504 = smul.u32 2, %s17
        $region48: #{classifier_forward.1} parent=39 // pred_fallthru
          _
      $region40: #{classifier_forward.1} parent=5 // pred_fallthru
        _
      %p505 = scmp.le.s32.totalorder 2, %s12
      // Predicated region
      $region49: #{classifier_forward.1} parent=5 // pred_check
        %p506 = pneg %p505
      $region50: #{classifier_forward.1} parent=5 // pred_check_branch
        %508 = sbr.rel (%p506) target = $region52
      $region51: #{classifier_forward.1} parent=5 // pred_region
        %s509 = ssub.s32 %s12, 2
        // Predicated region
        $region53: #{classifier_forward.1} parent=51 // pred_check
          %p510 = pneg %p151
        $region54: #{classifier_forward.1} parent=51 // pred_check_branch
          %512 = sbr.rel (%p510) target = $region56
        $region55: #{classifier_forward.1} parent=51 // pred_region
          %s513 = smul.u32 2, %s18
          %p514 = scmp.lt.s32.totalorder %s513, 3
          %s515 = scalar_select %p514, %s513, 3
          %s516 = smul.addr %s515, 8
          %s517 = scalar_lea.vmem %s5, %s516
        $region56: #{classifier_forward.1} parent=51 // pred_fallthru
          _
      $region52: #{classifier_forward.1} parent=5 // pred_fallthru
        _
    $region6: #{classifier_forward.1} parent=1 // loop_footer
      %s16 = sadd.s32 1, %s12
    $region7: #{classifier_forward.1} parent=1 // loop_footer_branch
      %11 = sbr.rel target = $region3
    $region8: #{classifier_forward.1} parent=1 // loop_exit
      _
    %518 = vsyncpa [#allocation3], 1
    %s519 = scalar_lea.sflag [#allocation3], 1
    %520 = vsyncpa %s519, 1

</llo_original>
